<compile_context>
chip_gen: v7x
topology: tpu7x:2x2x1
jax: 0.10.0
libtpu: 0.0.40
codegen_flags: <defaults>
</compile_context>

<pallas_src>
import jax
import jax.numpy as jnp
from jax.experimental import pallas as pl
from jax.experimental.pallas import tpu as pltpu


def _round_up(x, m):
    return (x + m - 1) // m * m


def _average_mil_kernel(x_ref, w1_ref, b1_ref, w2_ref, b2_ref, out_ref):
    # x_ref:  (TB, N, D) f32  — cast to bf16 in-kernel (halves x HBM traffic)
    # w1_ref: (D, Lp)    bf16    b1_ref: (1, Lp) f32
    # w2_ref: (Lp, Cp)   bf16    b2_ref: (1, Cp) f32
    # out_ref:(TB, Cp)   f32
    tb, n, d = x_ref.shape
    lp = w1_ref.shape[1]

    # feats_extractor: one (TB*N, D) @ (D, Lp) MXU matmul for all bags in the block.
    x2 = x_ref[...].reshape(tb * n, d).astype(jnp.bfloat16)
    h = jnp.dot(x2, w1_ref[...], preferred_element_type=jnp.float32)   # (TB*N, Lp) f32
    # TODO(synk): b1 could be folded into W1 via an augmented ones column (K 32->33)
    #             to shave one VALU op per h element; kept explicit for layout safety.
    h = jnp.maximum(h + b1_ref[...], 0.0)

    # Per-bag mean: f32 reshape-sum over the instance axis, exact f32 1/N scale.
    # (No O(TB^2) mask matmul, no bf16 copy of the hot h intermediate.)
    m = h.reshape(tb, n, lp).sum(axis=1) * (1.0 / n)                   # (TB, Lp) f32

    # classifier: Linear(L -> C)
    out = jnp.dot(m.astype(jnp.bfloat16), w2_ref[...],
                  preferred_element_type=jnp.float32) + b2_ref[...]
    out_ref[...] = out.astype(out_ref.dtype)


def _default_bags_per_step(B, N):
    """~1-4K instance rows per step; >=4 grid steps when B allows; divides B; 8-aligned."""
    rows_cap = 4096                              # f32 h block <= ~8 MiB at Lp=512
    tb = min(B, max(1, rows_cap // max(N, 1)))
    if B >= 32:
        tb = min(tb, B // 4)                     # pipeline depth / v7x megacore
    # tb must divide B; partial bag blocks must be sublane (8) aligned for the out store.
    while tb > 1 and (B % tb != 0 or (tb < B and tb % 8 != 0)):
        tb -= 1
    if tb < 1 or B % tb != 0:
        tb = B
    return tb


def average_mil_forward(data, w1, b1, w2, b2, *, bags_per_step=None):
    """data: (B, N, D) f32; w1: (D, L); b1: (L,); w2: (L, C); b2: (C,). Returns (B, C) f32."""
    B, N, D = data.shape
    L = w1.shape[1]
    C = w2.shape[1]
    Lp = _round_up(L, 128)   # 500 -> 512: lane-dense hidden dim
    Cp = _round_up(C, 128)   # 4   -> 128: unmasked lane-dense output stores

    tb = _default_bags_per_step(B, N) if bags_per_step is None else bags_per_step
    assert B % tb == 0, "bags_per_step must divide the number of bags"
    assert tb == B or tb % 8 == 0, "partial bag blocks must be sublane (8) aligned"
    num_steps = B // tb

    f32, bf16 = jnp.float32, jnp.bfloat16

    # Small zero-padded parameters (bf16 matmul operands, f32 biases); x is untouched.
    w1p = jnp.zeros((D, Lp), bf16).at[:, :L].set(w1.astype(bf16))
    b1p = jnp.zeros((1, Lp), f32).at[:, :L].set(b1.astype(f32))
    w2p = jnp.zeros((Lp, Cp), bf16).at[:L, :C].set(w2.astype(bf16))
    b2p = jnp.zeros((1, Cp), f32).at[:, :C].set(b2.astype(f32))

    out_padded = pl.pallas_call(
        _average_mil_kernel,
        out_shape=jax.ShapeDtypeStruct((B, Cp), f32),
        grid_spec=pltpu.PrefetchScalarGridSpec(
            num_scalar_prefetch=0,
            grid=(num_steps,),
            in_specs=[
                pl.BlockSpec((tb, N, D), lambda i: (i, 0, 0)),  # tb bags of raw f32 instances
                pl.BlockSpec((D, Lp), lambda i: (0, 0)),        # W1 (resident, constant index)
                pl.BlockSpec((1, Lp), lambda i: (0, 0)),        # b1
                pl.BlockSpec((Lp, Cp), lambda i: (0, 0)),       # W2 (resident)
                pl.BlockSpec((1, Cp), lambda i: (0, 0)),        # b2
            ],
            out_specs=pl.BlockSpec((tb, Cp), lambda i: (i, 0)),
        ),
        compiler_params=pltpu.CompilerParams(
            dimension_semantics=("parallel",),
            vmem_limit_bytes=48 * 1024 * 1024,  # > 16/32 MiB scoped defaults, < v7x 64 MiB physical
        ),
    )(data, w1p, b1p, w2p, b2p)

    return out_padded[:, :C]


def reference_forward_f32(data, w1, b1, w2, b2):
    """Module semantics in plain f32 (loose sanity check vs bf16-operand kernel)."""
    h = jnp.maximum(jnp.einsum("bnd,dl->bnl", data, w1) + b1, 0.0)
    m = jnp.mean(h, axis=1)
    return m @ w2 + b2


def reference_forward_bf16(data, w1, b1, w2, b2):
    """Same bf16-operand / f32-accumulate quantization chain as the kernel."""
    B, N, D = data.shape
    xb = data.reshape(B * N, D).astype(jnp.bfloat16)
    h = jnp.dot(xb, w1.astype(jnp.bfloat16), preferred_element_type=jnp.float32)
    h = jnp.maximum(h + b1[None, :], 0.0)
    m = h.reshape(B, N, -1).sum(axis=1) * (1.0 / N)
    return (jnp.dot(m.astype(jnp.bfloat16), w2.astype(jnp.bfloat16),
                    preferred_element_type=jnp.float32) + b2[None, :])


if __name__ == "__main__":
    nb_layers_in = 32   # D (input feature size)
    n_classes = 4       # C
    L = 500             # hidden size fixed by the module
    B, N = 2, 8         # 2 bags, 8 instances each (equal-length bags)

    key = jax.random.PRNGKey(0)
    k_x, k_w1, k_b1, k_w2, k_b2 = jax.random.split(key, 5)

    data = jax.random.normal(k_x, (B, N, nb_layers_in), dtype=jnp.float32)
    # Deterministic synthetic parameters (shapes match the nn.Linear layers, [in, out]).
    w1 = jax.random.normal(k_w1, (nb_layers_in, L), dtype=jnp.float32) * 0.05
    b1 = jax.random.normal(k_b1, (L,), dtype=jnp.float32) * 0.05
    w2 = jax.random.normal(k_w2, (L, n_classes), dtype=jnp.float32) * 0.05
    b2 = jax.random.normal(k_b2, (n_classes,), dtype=jnp.float32) * 0.05

    out = jax.block_until_ready(average_mil_forward(data, w1, b1, w2, b2))
    assert out.shape == (B, n_classes)

    ref_q = reference_forward_bf16(data, w1, b1, w2, b2)  # matched quantization chain
    ref_f = reference_forward_f32(data, w1, b1, w2, b2)   # pure-f32 module semantics
    assert jnp.allclose(out, ref_q, atol=1e-4, rtol=1e-4), (out, ref_q)
    assert jnp.allclose(out, ref_f, atol=2e-2, rtol=2e-2), (out, ref_f)

    print("KERNEL_OK")
</pallas_src>

<mosaic_0001>
module attributes {stable_mosaic.version = 11 : i64} {
  func.func @_average_mil_kernel(%arg0: i32, %arg1: memref<2x8x32xf32, #tpu.memory_space<vmem>>, %arg2: memref<32x512xbf16, #tpu.memory_space<vmem>>, %arg3: memref<1x512xf32, #tpu.memory_space<vmem>>, %arg4: memref<512x128xbf16, #tpu.memory_space<vmem>>, %arg5: memref<1x128xf32, #tpu.memory_space<vmem>>, %arg6: memref<2x128xf32, #tpu.memory_space<vmem>>) attributes {dimension_semantics = [#tpu.dimension_semantics<parallel>], iteration_bounds = array<i64: 1>, scalar_prefetch = 0 : i64, scratch_operands = 0 : i64, tpu.core_type = #tpu.core_type<tc>, window_params = [{transform_indices = @transform_0, window_bounds = array<i64: 2, 8, 32>}, {pipeline_mode = #tpu.pipeline_mode<synchronous>, transform_indices = @transform_1, window_bounds = array<i64: 32, 512>}, {pipeline_mode = #tpu.pipeline_mode<synchronous>, transform_indices = @transform_2, window_bounds = array<i64: 1, 512>}, {pipeline_mode = #tpu.pipeline_mode<synchronous>, transform_indices = @transform_3, window_bounds = array<i64: 512, 128>}, {pipeline_mode = #tpu.pipeline_mode<synchronous>, transform_indices = @transform_4, window_bounds = array<i64: 1, 128>}, {transform_indices = @transform_5, window_bounds = array<i64: 2, 128>}]} {
    %c0 = arith.constant 0 : index
    %c0_0 = arith.constant 0 : index
    %c0_1 = arith.constant 0 : index
    %0 = vector.load %arg1[%c0, %c0_0, %c0_1] : memref<2x8x32xf32, #tpu.memory_space<vmem>>, vector<2x8x32xf32>
    %1 = vector.shape_cast %0 : vector<2x8x32xf32> to vector<16x32xf32>
    %2 = arith.truncf %1 : vector<16x32xf32> to vector<16x32xbf16>
    %c0_2 = arith.constant 0 : index
    %c0_3 = arith.constant 0 : index
    %3 = vector.load %arg2[%c0_2, %c0_3] : memref<32x512xbf16, #tpu.memory_space<vmem>>, vector<32x512xbf16>
    %cst = arith.constant dense<0.000000e+00> : vector<16x512xf32>
    %4 = tpu.matmul %2, %3, %cst {dimension_numbers = #tpu.dot_dimension_numbers<[1], [0], [0], [1], [0, 0, 1, 1], [], []>} : vector<16x32xbf16>, vector<32x512xbf16>, vector<16x512xf32> -> vector<16x512xf32>
    %c0_4 = arith.constant 0 : index
    %c0_5 = arith.constant 0 : index
    %5 = vector.load %arg3[%c0_4, %c0_5] : memref<1x512xf32, #tpu.memory_space<vmem>>, vector<1x512xf32>
    %6 = vector.broadcast %5 : vector<1x512xf32> to vector<16x512xf32>
    %7 = arith.addf %4, %6 : vector<16x512xf32>
    %cst_6 = arith.constant 0.000000e+00 : f32
    %8 = vector.broadcast %cst_6 : f32 to vector<16x512xf32>
    %9 = arith.maximumf %7, %8 : vector<16x512xf32>
    %10 = vector.shape_cast %9 : vector<16x512xf32> to vector<2x8x512xf32>
    %cst_7 = arith.constant dense<0.000000e+00> : vector<2x512xf32>
    %11 = vector.multi_reduction <add>, %10, %cst_7 [1] : vector<2x8x512xf32> to vector<2x512xf32>
    %cst_8 = arith.constant 1.250000e-01 : f32
    %12 = vector.broadcast %cst_8 : f32 to vector<2x512xf32>
    %13 = arith.mulf %11, %12 : vector<2x512xf32>
    %14 = arith.truncf %13 : vector<2x512xf32> to vector<2x512xbf16>
    %c0_9 = arith.constant 0 : index
    %c0_10 = arith.constant 0 : index
    %15 = vector.load %arg4[%c0_9, %c0_10] : memref<512x128xbf16, #tpu.memory_space<vmem>>, vector<512x128xbf16>
    %cst_11 = arith.constant dense<0.000000e+00> : vector<2x128xf32>
    %16 = tpu.matmul %14, %15, %cst_11 {dimension_numbers = #tpu.dot_dimension_numbers<[1], [0], [0], [1], [0, 0, 1, 1], [], []>} : vector<2x512xbf16>, vector<512x128xbf16>, vector<2x128xf32> -> vector<2x128xf32>
    %c0_12 = arith.constant 0 : index
    %c0_13 = arith.constant 0 : index
    %17 = vector.load %arg5[%c0_12, %c0_13] : memref<1x128xf32, #tpu.memory_space<vmem>>, vector<1x128xf32>
    %18 = vector.broadcast %17 : vector<1x128xf32> to vector<2x128xf32>
    %19 = arith.addf %16, %18 : vector<2x128xf32>
    %c0_14 = arith.constant 0 : index
    %c0_15 = arith.constant 0 : index
    %20 = vector.load %arg6[%c0_14, %c0_15] : memref<2x128xf32, #tpu.memory_space<vmem>>, vector<2x128xf32>
    tpu.vector_store %arg6[%c0_14, %c0_15], %19 {strides = array<i32>} : memref<2x128xf32, #tpu.memory_space<vmem>>, vector<2x128xf32>,
    return
  }
  func.func @transform_0(%arg0: i32) -> (i32, i32, i32) {
    %c0_i32 = arith.constant 0 : i32
    %c0_i32_0 = arith.constant 0 : i32
    %c0_i32_1 = arith.constant 0 : i32
    return %arg0, %c0_i32, %c0_i32_0 : i32, i32, i32
  }
  func.func @transform_1(%arg0: i32) -> (i32, i32) {
    %c0_i32 = arith.constant 0 : i32
    %c0_i32_0 = arith.constant 0 : i32
    %c0_i32_1 = arith.constant 0 : i32
    return %c0_i32, %c0_i32_0 : i32, i32
  }
  func.func @transform_2(%arg0: i32) -> (i32, i32) {
    %c0_i32 = arith.constant 0 : i32
    %c0_i32_0 = arith.constant 0 : i32
    %c0_i32_1 = arith.constant 0 : i32
    return %c0_i32, %c0_i32_0 : i32, i32
  }
  func.func @transform_3(%arg0: i32) -> (i32, i32) {
    %c0_i32 = arith.constant 0 : i32
    %c0_i32_0 = arith.constant 0 : i32
    %c0_i32_1 = arith.constant 0 : i32
    return %c0_i32, %c0_i32_0 : i32, i32
  }
  func.func @transform_4(%arg0: i32) -> (i32, i32) {
    %c0_i32 = arith.constant 0 : i32
    %c0_i32_0 = arith.constant 0 : i32
    %c0_i32_1 = arith.constant 0 : i32
    return %c0_i32, %c0_i32_0 : i32, i32
  }
  func.func @transform_5(%arg0: i32) -> (i32, i32) {
    %c0_i32 = arith.constant 0 : i32
    %c0_i32_0 = arith.constant 0 : i32
    return %arg0, %c0_i32 : i32, i32
  }
}

</mosaic_0001>

<llo_original>
// kernel: tpu_custom_call.1
$region0: #{tpu_custom_call.1}
  #allocation0 [shape = 'u32[]', space=smem, size = 0x4, offset = 0x4, fixed_abs, tag = 'smem constant byte address 0x4 - core index']
  #allocation1 [shape = 'u32[144,128]{1,0:T(1,128)}', space=vmem, size = 0x12000, scoped, tag = 'internal scratch']
  %s0 = inlined_call_operand.hbm [shape: f32[2,8,32], index: 0, kind: input, shape index: {}]
  %s1 = inlined_call_operand.hbm [shape: bf16[32,512], index: 1, kind: input, shape index: {}]
  %s2 = inlined_call_operand.vmem [shape: f32[1,512], index: 2, kind: input, shape index: {}]
  %s3 = inlined_call_operand.hbm [shape: bf16[512,128], index: 3, kind: input, shape index: {}]
  %s4 = inlined_call_operand.vmem [shape: f32[1,128], index: 4, kind: input, shape index: {}]
  %s5 = inlined_call_operand.hbm [shape: f32[2,128], index: 5, kind: output, shape index: {}]
  %s6 = sld [smem:[#allocation0]]
  $region42: #{tpu_custom_call.1} parent=0
    _
  %s8 = ssub.s32 1, %s6
  %s9 = scalar_select 0, %s8, %s6
  $region1: #{tpu_custom_call.1} parent=0
    #allocation2 [shape = 'u8[8192]{0}', space=vmem, size = 0x2000, scoped, tag = 'input window, operand 0, single buffered']
    #allocation3 [shape = 's32[1]{0}', space=sflag, size = 0x4, scoped, tag = 'scoped memory for tpu_custom_call.1']
    #allocation4 [shape = 's32[1]{0}', space=sflag, size = 0x4, scoped, tag = 'scoped memory for tpu_custom_call.1']
    #allocation5 [shape = 'u8[32768]{0}', space=vmem, size = 0x8000, scoped, tag = 'input window, operand 1, single buffered']
    #allocation6 [shape = 's32[1]{0}', space=sflag, size = 0x4, scoped, tag = 'scoped memory for tpu_custom_call.1']
    #allocation7 [shape = 'u8[131072]{0}', space=vmem, size = 0x20000, scoped, tag = 'input window, operand 3, single buffered']
    #allocation8 [shape = 'u8[1024]{0}', space=vmem, size = 0x400, scoped, tag = 'output window, operand 0, single buffered']
    %10 = vsyncpa [#allocation3], 0
    %11 = vsyncpa [#allocation6], 0
    %12 = vsyncpa [#allocation4], 0
    // Predicated region
    $region2: #{tpu_custom_call.1} parent=1 // pred_check
      _
    $region3: #{tpu_custom_call.1} parent=1 // pred_check_branch
      %14 = sbr.rel (0) target = $region5
    $region4: #{tpu_custom_call.1} parent=1 // pred_region
      %s16 = ssub.s32 256, 256
      %17 = vsyncadd [#allocation3], %s16
      %s18 = sshll.u32 [#allocation2], 4
      %s19 = int_to_ptr.vmem [resolvable:$true] %s18
      %24 = dma.hbm_to_vmem [thread:$0]  %s0, 256, %s19, [#allocation3], 128, 128, 8
    $region5: #{tpu_custom_call.1} parent=1 // pred_fallthru
      _
    // Predicated region
    $region6: #{tpu_custom_call.1} parent=1 // pred_check
      _
    $region7: #{tpu_custom_call.1} parent=1 // pred_check_branch
      %26 = sbr.rel (0) target = $region9
    $region8: #{tpu_custom_call.1} parent=1 // pred_region
      %s28 = ssub.s32 1024, 1024
      %29 = vsyncadd [#allocation6], %s28
      %s30 = sshll.u32 [#allocation5], 4
      %s31 = int_to_ptr.vmem [resolvable:$true] %s30
      %36 = dma.hbm_to_vmem [thread:$0]  %s1, 1024, %s31, [#allocation6], 256, 256, 16
    $region9: #{tpu_custom_call.1} parent=1 // pred_fallthru
      _
    // Predicated region
    $region10: #{tpu_custom_call.1} parent=1 // pred_check
      _
    $region11: #{tpu_custom_call.1} parent=1 // pred_check_branch
      %38 = sbr.rel (0) target = $region13
    $region12: #{tpu_custom_call.1} parent=1 // pred_region
      _
    $region13: #{tpu_custom_call.1} parent=1 // pred_fallthru
      _
    // Predicated region
    $region14: #{tpu_custom_call.1} parent=1 // pred_check
      _
    $region15: #{tpu_custom_call.1} parent=1 // pred_check_branch
      %40 = sbr.rel (0) target = $region17
    $region16: #{tpu_custom_call.1} parent=1 // pred_region
      %s42 = ssub.s32 4096, 4096
      %43 = vsyncadd [#allocation6], %s42
      %s44 = sshll.u32 [#allocation7], 4
      %s45 = int_to_ptr.vmem [resolvable:$true] %s44
      %50 = dma.hbm_to_vmem [thread:$0]  %s3, 4096, %s45, [#allocation6], 64, 64, 4
    $region17: #{tpu_custom_call.1} parent=1 // pred_fallthru
      _
    // Predicated region
    $region18: #{tpu_custom_call.1} parent=1 // pred_check
      _
    $region19: #{tpu_custom_call.1} parent=1 // pred_check_branch
      %52 = sbr.rel (0) target = $region21
    $region20: #{tpu_custom_call.1} parent=1 // pred_region
      _
    $region21: #{tpu_custom_call.1} parent=1 // pred_fallthru
      _
    // Predicated region
    $region22: #{tpu_custom_call.1} parent=1 // pred_check
      _
    $region23: #{tpu_custom_call.1} parent=1 // pred_check_branch
      %54 = sbr.rel (0) target = $region25
    $region24: #{tpu_custom_call.1} parent=1 // pred_region
      %55 = dma.done [#allocation3], 256
    $region25: #{tpu_custom_call.1} parent=1 // pred_fallthru
      _
    // Predicated region
    $region26: #{tpu_custom_call.1} parent=1 // pred_check
      _
    $region27: #{tpu_custom_call.1} parent=1 // pred_check_branch
      %57 = sbr.rel (0) target = $region29
    $region28: #{tpu_custom_call.1} parent=1 // pred_region
      %58 = dma.done [#allocation6], 1024
    $region29: #{tpu_custom_call.1} parent=1 // pred_fallthru
      _
    // Predicated region
    $region30: #{tpu_custom_call.1} parent=1 // pred_check
      _
    $region31: #{tpu_custom_call.1} parent=1 // pred_check_branch
      %60 = sbr.rel (0) target = $region33
    $region32: #{tpu_custom_call.1} parent=1 // pred_region
      %61 = dma.done [#allocation6], 4096
    $region33: #{tpu_custom_call.1} parent=1 // pred_fallthru
      _
    %v63 = vld [vmem:[#allocation2] sm:$0xff]
    %v64 = vld [vmem:[#allocation2 + $0x8] sm:$0xff]
    %v65 = vpack.c.bf16 %v64, %v63
    %v66 = vld [vmem:[#allocation5] sm:$0xff]
    %v67 = vld [vmem:[#allocation5 + $0x8] sm:$0xff]
    %v68 = vld [vmem:[#allocation5 + $0x10] sm:$0xff]
    %v69 = vld [vmem:[#allocation5 + $0x18] sm:$0xff]
    %v70 = vld [vmem:[#allocation5 + $0x20] sm:$0xff]
    %v71 = vld [vmem:[#allocation5 + $0x28] sm:$0xff]
    %v72 = vld [vmem:[#allocation5 + $0x30] sm:$0xff]
    %v73 = vld [vmem:[#allocation5 + $0x38] sm:$0xff]
    %v74 = vld [vmem:[%s2] sm:$0xf]
    %v76 = vlaneseq
    %v77 = vshrl.u32 %v76, 7
    %v78 = vsub.s32 0, %v77
    %v79 = vrot.slane %v74, %v78
    %v80 = vlaneseq
    %v81 = vshrl.u32 %v80, 7
    %v82 = vsub.s32 1, %v81
    %v83 = vrot.slane %v74, %v82
    %v84 = vlaneseq
    %v85 = vshrl.u32 %v84, 7
    %v86 = vsub.s32 2, %v85
    %v87 = vrot.slane %v74, %v86
    %v88 = vlaneseq
    %v89 = vshrl.u32 %v88, 7
    %v90 = vsub.s32 3, %v89
    %v91 = vrot.slane %v74, %v90
    %v104 = vunpack.c.l.b16 %v66
    %v105 = vunpack.c.h.b16 %v66
    %v106 = vunpack.c.l.b16 %v67
    %v107 = vunpack.c.h.b16 %v67
    %v108 = vunpack.c.l.b16 %v68
    %v109 = vunpack.c.h.b16 %v68
    %v110 = vunpack.c.l.b16 %v69
    %v111 = vunpack.c.h.b16 %v69
    %v112 = vunpack.c.l.b16 %v70
    %v113 = vunpack.c.h.b16 %v70
    %v114 = vunpack.c.l.b16 %v71
    %v115 = vunpack.c.h.b16 %v71
    %v116 = vunpack.c.l.b16 %v72
    %v117 = vunpack.c.h.b16 %v72
    %v118 = vunpack.c.l.b16 %v73
    %v119 = vunpack.c.h.b16 %v73
    %v120 = vpack.c.b16 %v108, %v104
    %v121 = vpack.c.b16 %v109, %v105
    %v122 = vpack.c.b16 %v110, %v106
    %v123 = vpack.c.b16 %v111, %v107
    %v124 = vpack.c.b16 %v116, %v112
    %v125 = vpack.c.b16 %v117, %v113
    %v126 = vpack.c.b16 %v118, %v114
    %v127 = vpack.c.b16 %v119, %v115
    %vm136 = vcmask 261120
    %v138 = vsel %vm136, %v65, 0
    %140 = vmatprep.subr.bf16.mxu0 %v121
    %141 = vmatpush1.bf16.msra.mxu0 %v120
    %142 = vmatprep.subr.bf16.mxu0 %v125
    %143 = vmatpush1.bf16.msra.mxu0 %v124
    %144 = vmatprep.subr.bf16.mxu0 0
    %145 = vmatpush1.bf16.msra.mxu0 0
    %146 = vmatprep.subr.bf16.mxu0 0
    %147 = vmatpush1.bf16.msra.mxu0 0
    %148 = vmatprep.subr.bf16.mxu0 0
    %149 = vmatpush1.bf16.msra.mxu0 0
    %150 = vmatprep.subr.bf16.mxu0 0
    %151 = vmatpush1.bf16.msra.mxu0 0
    %152 = vmatprep.subr.bf16.mxu0 0
    %153 = vmatpush1.bf16.msra.mxu0 0
    %154 = vmatprep.subr.bf16.mxu0 0
    %155 = vmatpush1.bf16.msra.mxu0 0
    %156 = vmatprep.subr.bf16.mxu0 0
    %157 = vmatpush1.bf16.msra.mxu0 0
    %158 = vmatprep.subr.bf16.mxu0 0
    %159 = vmatpush1.bf16.msra.mxu0 0
    %160 = vmatprep.subr.bf16.mxu0 0
    %161 = vmatpush1.bf16.msra.mxu0 0
    %162 = vmatprep.subr.bf16.mxu0 0
    %163 = vmatpush1.bf16.msra.mxu0 0
    %164 = vmatprep.subr.bf16.mxu0 0
    %165 = vmatpush1.bf16.msra.mxu0 0
    %166 = vmatprep.subr.bf16.mxu0 0
    %167 = vmatpush1.bf16.msra.mxu0 0
    %168 = vmatprep.subr.bf16.mxu0 0
    %169 = vmatpush1.bf16.msra.mxu0 0
    %170 = vmatprep.subr.bf16.mxu0 0
    %171 = vmatpush1.bf16.msra.mxu0 0
    %172 = vmatprep.mubr.bf16.mxu0 0
    %173 = vmatmul.mubr.bf16.gmra.mrb[0].mxu0 %v138
    %v174 = vpop.f32.mrb[0].mxu0
    %v175 = vadd.f32 %v79, %v174
    %v176 = vpop.f32.mrb[0].mxu0
    %v177 = vadd.f32 %v83, %v176
    %v178 = vpop.f32.mrb[0].mxu0
    %v179 = vadd.f32 %v79, %v178
    %v180 = vpop.f32.mrb[0].mxu0
    %v181 = vadd.f32 %v83, %v180
    %182 = vdwg.mxu0
    %183 = vmatprep.subr.bf16.mxu0 %v123
    %184 = vmatpush1.bf16.msra.mxu0 %v122
    %185 = vmatprep.subr.bf16.mxu0 %v127
    %186 = vmatpush1.bf16.msra.mxu0 %v126
    %187 = vmatprep.subr.bf16.mxu0 0
    %188 = vmatpush1.bf16.msra.mxu0 0
    %189 = vmatprep.subr.bf16.mxu0 0
    %190 = vmatpush1.bf16.msra.mxu0 0
    %191 = vmatprep.subr.bf16.mxu0 0
    %192 = vmatpush1.bf16.msra.mxu0 0
    %193 = vmatprep.subr.bf16.mxu0 0
    %194 = vmatpush1.bf16.msra.mxu0 0
    %195 = vmatprep.subr.bf16.mxu0 0
    %196 = vmatpush1.bf16.msra.mxu0 0
    %197 = vmatprep.subr.bf16.mxu0 0
    %198 = vmatpush1.bf16.msra.mxu0 0
    %199 = vmatprep.subr.bf16.mxu0 0
    %200 = vmatpush1.bf16.msra.mxu0 0
    %201 = vmatprep.subr.bf16.mxu0 0
    %202 = vmatpush1.bf16.msra.mxu0 0
    %203 = vmatprep.subr.bf16.mxu0 0
    %204 = vmatpush1.bf16.msra.mxu0 0
    %205 = vmatprep.subr.bf16.mxu0 0
    %206 = vmatpush1.bf16.msra.mxu0 0
    %207 = vmatprep.subr.bf16.mxu0 0
    %208 = vmatpush1.bf16.msra.mxu0 0
    %209 = vmatprep.subr.bf16.mxu0 0
    %210 = vmatpush1.bf16.msra.mxu0 0
    %211 = vmatprep.subr.bf16.mxu0 0
    %212 = vmatpush1.bf16.msra.mxu0 0
    %213 = vmatprep.subr.bf16.mxu0 0
    %214 = vmatpush1.bf16.msra.mxu0 0
    %215 = vmatprep.mubr.bf16.mxu0 0
    %216 = vmatmul.mubr.bf16.gmra.mrb[0].mxu0 %v138
    %v217 = vpop.f32.mrb[0].mxu0
    %v218 = vadd.f32 %v87, %v217
    %v219 = vpop.f32.mrb[0].mxu0
    %v220 = vadd.f32 %v91, %v219
    %v221 = vpop.f32.mrb[0].mxu0
    %v222 = vadd.f32 %v87, %v221
    %v223 = vpop.f32.mrb[0].mxu0
    %v224 = vadd.f32 %v91, %v223
    %225 = vdwg.mxu0
    %v226 = vmax.f32 %v175, 0.0
    %v227 = vmax.f32 %v177, 0.0
    %v228 = vmax.f32 %v218, 0.0
    %v229 = vmax.f32 %v220, 0.0
    %v230 = vmax.f32 %v179, 0.0
    %v231 = vmax.f32 %v181, 0.0
    %v232 = vmax.f32 %v222, 0.0
    %v233 = vmax.f32 %v224, 0.0
    %v234 = vrot.slane %v226, 4
    %v235 = vadd.f32 %v226, %v234
    %v236 = vrot.slane %v235, 2
    %v237 = vadd.f32 %v235, %v236
    %v238 = vrot.slane %v237, 1
    %v239 = vadd.f32 %v237, %v238
    %v240 = vrot.slane %v227, 4
    %v241 = vadd.f32 %v227, %v240
    %v242 = vrot.slane %v241, 2
    %v243 = vadd.f32 %v241, %v242
    %v244 = vrot.slane %v243, 1
    %v245 = vadd.f32 %v243, %v244
    %v246 = vrot.slane %v228, 4
    %v247 = vadd.f32 %v228, %v246
    %v248 = vrot.slane %v247, 2
    %v249 = vadd.f32 %v247, %v248
    %v250 = vrot.slane %v249, 1
    %v251 = vadd.f32 %v249, %v250
    %v252 = vrot.slane %v229, 4
    %v253 = vadd.f32 %v229, %v252
    %v254 = vrot.slane %v253, 2
    %v255 = vadd.f32 %v253, %v254
    %v256 = vrot.slane %v255, 1
    %v257 = vadd.f32 %v255, %v256
    %v258 = vrot.slane %v230, 4
    %v259 = vadd.f32 %v230, %v258
    %v260 = vrot.slane %v259, 2
    %v261 = vadd.f32 %v259, %v260
    %v262 = vrot.slane %v261, 1
    %v263 = vadd.f32 %v261, %v262
    %v264 = vrot.slane %v231, 4
    %v265 = vadd.f32 %v231, %v264
    %v266 = vrot.slane %v265, 2
    %v267 = vadd.f32 %v265, %v266
    %v268 = vrot.slane %v267, 1
    %v269 = vadd.f32 %v267, %v268
    %v270 = vrot.slane %v232, 4
    %v271 = vadd.f32 %v232, %v270
    %v272 = vrot.slane %v271, 2
    %v273 = vadd.f32 %v271, %v272
    %v274 = vrot.slane %v273, 1
    %v275 = vadd.f32 %v273, %v274
    %v276 = vrot.slane %v233, 4
    %v277 = vadd.f32 %v233, %v276
    %v278 = vrot.slane %v277, 2
    %v279 = vadd.f32 %v277, %v278
    %v280 = vrot.slane %v279, 1
    %v281 = vadd.f32 %v279, %v280
    %v282 = vmul.f32 %v239, 0.125
    %v283 = vmul.f32 %v245, 0.125
    %v284 = vmul.f32 %v251, 0.125
    %v285 = vmul.f32 %v257, 0.125
    %v286 = vmul.f32 %v263, 0.125
    %v287 = vmul.f32 %v269, 0.125
    %v288 = vmul.f32 %v275, 0.125
    %v289 = vmul.f32 %v281, 0.125
    %v290 = vpack.c.bf16 %v282, %v282
    %v291 = vpack.c.bf16 %v283, %v283
    %v292 = vpack.c.bf16 %v284, %v284
    %v293 = vpack.c.bf16 %v285, %v285
    %v294 = vpack.c.bf16 %v286, %v286
    %v295 = vpack.c.bf16 %v287, %v287
    %v296 = vpack.c.bf16 %v288, %v288
    %v297 = vpack.c.bf16 %v289, %v289
    %v298 = vld [vmem:[#allocation7] sm:$0xf]
    %v299 = vld [vmem:[#allocation7 + $0x4] sm:$0xf]
    %v300 = vld [vmem:[#allocation7 + $0x8] sm:$0xf]
    %v301 = vld [vmem:[#allocation7 + $0xc] sm:$0xf]
    %v302 = vld [vmem:[#allocation7 + $0x10] sm:$0xf]
    %v303 = vld [vmem:[#allocation7 + $0x14] sm:$0xf]
    %v304 = vld [vmem:[#allocation7 + $0x18] sm:$0xf]
    %v305 = vld [vmem:[#allocation7 + $0x1c] sm:$0xf]
    %v306 = vld [vmem:[#allocation7 + $0x20] sm:$0xf]
    %v307 = vld [vmem:[#allocation7 + $0x24] sm:$0xf]
    %v308 = vld [vmem:[#allocation7 + $0x28] sm:$0xf]
    %v309 = vld [vmem:[#allocation7 + $0x2c] sm:$0xf]
    %v310 = vld [vmem:[#allocation7 + $0x30] sm:$0xf]
    %v311 = vld [vmem:[#allocation7 + $0x34] sm:$0xf]
    %v312 = vld [vmem:[#allocation7 + $0x38] sm:$0xf]
    %v313 = vld [vmem:[#allocation7 + $0x3c] sm:$0xf]
    %v314 = vld [vmem:[#allocation7 + $0x40] sm:$0xf]
    %v315 = vld [vmem:[#allocation7 + $0x44] sm:$0xf]
    %v316 = vld [vmem:[#allocation7 + $0x48] sm:$0xf]
    %v317 = vld [vmem:[#allocation7 + $0x4c] sm:$0xf]
    %v318 = vld [vmem:[#allocation7 + $0x50] sm:$0xf]
    %v319 = vld [vmem:[#allocation7 + $0x54] sm:$0xf]
    %v320 = vld [vmem:[#allocation7 + $0x58] sm:$0xf]
    %v321 = vld [vmem:[#allocation7 + $0x5c] sm:$0xf]
    %v322 = vld [vmem:[#allocation7 + $0x60] sm:$0xf]
    %v323 = vld [vmem:[#allocation7 + $0x64] sm:$0xf]
    %v324 = vld [vmem:[#allocation7 + $0x68] sm:$0xf]
    %v325 = vld [vmem:[#allocation7 + $0x6c] sm:$0xf]
    %v326 = vld [vmem:[#allocation7 + $0x70] sm:$0xf]
    %v327 = vld [vmem:[#allocation7 + $0x74] sm:$0xf]
    %v328 = vld [vmem:[#allocation7 + $0x78] sm:$0xf]
    %v329 = vld [vmem:[#allocation7 + $0x7c] sm:$0xf]
    %v330 = vld [vmem:[#allocation7 + $0x80] sm:$0xf]
    %v331 = vld [vmem:[#allocation7 + $0x84] sm:$0xf]
    %v332 = vld [vmem:[#allocation7 + $0x88] sm:$0xf]
    %v333 = vld [vmem:[#allocation7 + $0x8c] sm:$0xf]
    %v334 = vld [vmem:[#allocation7 + $0x90] sm:$0xf]
    %v335 = vld [vmem:[#allocation7 + $0x94] sm:$0xf]
    %v336 = vld [vmem:[#allocation7 + $0x98] sm:$0xf]
    %v337 = vld [vmem:[#allocation7 + $0x9c] sm:$0xf]
    %v338 = vld [vmem:[#allocation7 + $0xa0] sm:$0xf]
    %v339 = vld [vmem:[#allocation7 + $0xa4] sm:$0xf]
    %v340 = vld [vmem:[#allocation7 + $0xa8] sm:$0xf]
    %v341 = vld [vmem:[#allocation7 + $0xac] sm:$0xf]
    %v342 = vld [vmem:[#allocation7 + $0xb0] sm:$0xf]
    %v343 = vld [vmem:[#allocation7 + $0xb4] sm:$0xf]
    %v344 = vld [vmem:[#allocation7 + $0xb8] sm:$0xf]
    %v345 = vld [vmem:[#allocation7 + $0xbc] sm:$0xf]
    %v346 = vld [vmem:[#allocation7 + $0xc0] sm:$0xf]
    %v347 = vld [vmem:[#allocation7 + $0xc4] sm:$0xf]
    %v348 = vld [vmem:[#allocation7 + $0xc8] sm:$0xf]
    %v349 = vld [vmem:[#allocation7 + $0xcc] sm:$0xf]
    %v350 = vld [vmem:[#allocation7 + $0xd0] sm:$0xf]
    %v351 = vld [vmem:[#allocation7 + $0xd4] sm:$0xf]
    %v352 = vld [vmem:[#allocation7 + $0xd8] sm:$0xf]
    %v353 = vld [vmem:[#allocation7 + $0xdc] sm:$0xf]
    %v354 = vld [vmem:[#allocation7 + $0xe0] sm:$0xf]
    %v355 = vld [vmem:[#allocation7 + $0xe4] sm:$0xf]
    %v356 = vld [vmem:[#allocation7 + $0xe8] sm:$0xf]
    %v357 = vld [vmem:[#allocation7 + $0xec] sm:$0xf]
    %v358 = vld [vmem:[#allocation7 + $0xf0] sm:$0xf]
    %v359 = vld [vmem:[#allocation7 + $0xf4] sm:$0xf]
    %v360 = vld [vmem:[#allocation7 + $0xf8] sm:$0xf]
    %v361 = vld [vmem:[#allocation7 + $0xfc] sm:$0xf]
    %v362 = vld [vmem:[%s4] sm:$0x1]
    %v364 = vlaneseq
    %v365 = vshrl.u32 %v364, 7
    %v366 = vsub.s32 0, %v365
    %v367 = vrot.slane %v362, %v366
    %v377 = vunpack.c.l.b16 %v290
    %v378 = vunpack.c.l.b16 %v291
    %v379 = vunpack.c.l.b16 %v292
    %v380 = vunpack.c.l.b16 %v293
    %v381 = vunpack.c.l.b16 %v294
    %v382 = vunpack.c.l.b16 %v295
    %v383 = vunpack.c.l.b16 %v296
    %v384 = vunpack.c.l.b16 %v297
    %vm385 = vcmask 1041409
    %v386 = vsel %vm385, %v381, %v377
    %v387 = vsel %vm385, %v382, %v378
    %v388 = vsel %vm385, %v383, %v379
    %v389 = vsel %vm385, %v384, %v380
    %v390 = vpack.c.b16 %v386, %v386
    %v391 = vpack.c.b16 %v387, %v387
    %v392 = vpack.c.b16 %v388, %v388
    %v393 = vpack.c.b16 %v389, %v389
    %v462 = vunpack.c.l.b16 %v298
    %v463 = vunpack.c.l.b16 %v299
    %v464 = vunpack.c.l.b16 %v300
    %v465 = vunpack.c.l.b16 %v301
    %v466 = vunpack.c.l.b16 %v302
    %v467 = vunpack.c.l.b16 %v303
    %v468 = vunpack.c.l.b16 %v304
    %v469 = vunpack.c.l.b16 %v305
    %v470 = vunpack.c.l.b16 %v306
    %v471 = vunpack.c.l.b16 %v307
    %v472 = vunpack.c.l.b16 %v308
    %v473 = vunpack.c.l.b16 %v309
    %v474 = vunpack.c.l.b16 %v310
    %v475 = vunpack.c.l.b16 %v311
    %v476 = vunpack.c.l.b16 %v312
    %v477 = vunpack.c.l.b16 %v313
    %v478 = vunpack.c.l.b16 %v314
    %v479 = vunpack.c.l.b16 %v315
    %v480 = vunpack.c.l.b16 %v316
    %v481 = vunpack.c.l.b16 %v317
    %v482 = vunpack.c.l.b16 %v318
    %v483 = vunpack.c.l.b16 %v319
    %v484 = vunpack.c.l.b16 %v320
    %v485 = vunpack.c.l.b16 %v321
    %v486 = vunpack.c.l.b16 %v322
    %v487 = vunpack.c.l.b16 %v323
    %v488 = vunpack.c.l.b16 %v324
    %v489 = vunpack.c.l.b16 %v325
    %v490 = vunpack.c.l.b16 %v326
    %v491 = vunpack.c.l.b16 %v327
    %v492 = vunpack.c.l.b16 %v328
    %v493 = vunpack.c.l.b16 %v329
    %v494 = vunpack.c.l.b16 %v330
    %v495 = vunpack.c.l.b16 %v331
    %v496 = vunpack.c.l.b16 %v332
    %v497 = vunpack.c.l.b16 %v333
    %v498 = vunpack.c.l.b16 %v334
    %v499 = vunpack.c.l.b16 %v335
    %v500 = vunpack.c.l.b16 %v336
    %v501 = vunpack.c.l.b16 %v337
    %v502 = vunpack.c.l.b16 %v338
    %v503 = vunpack.c.l.b16 %v339
    %v504 = vunpack.c.l.b16 %v340
    %v505 = vunpack.c.l.b16 %v341
    %v506 = vunpack.c.l.b16 %v342
    %v507 = vunpack.c.l.b16 %v343
    %v508 = vunpack.c.l.b16 %v344
    %v509 = vunpack.c.l.b16 %v345
    %v510 = vunpack.c.l.b16 %v346
    %v511 = vunpack.c.l.b16 %v347
    %v512 = vunpack.c.l.b16 %v348
    %v513 = vunpack.c.l.b16 %v349
    %v514 = vunpack.c.l.b16 %v350
    %v515 = vunpack.c.l.b16 %v351
    %v516 = vunpack.c.l.b16 %v352
    %v517 = vunpack.c.l.b16 %v353
    %v518 = vunpack.c.l.b16 %v354
    %v519 = vunpack.c.l.b16 %v355
    %v520 = vunpack.c.l.b16 %v356
    %v521 = vunpack.c.l.b16 %v357
    %v522 = vunpack.c.l.b16 %v358
    %v523 = vunpack.c.l.b16 %v359
    %v524 = vunpack.c.l.b16 %v360
    %v525 = vunpack.c.l.b16 %v361
    %v526 = vpack.c.b16 %v463, %v462
    %v527 = vpack.c.b16 %v465, %v464
    %v528 = vpack.c.b16 %v467, %v466
    %v529 = vpack.c.b16 %v469, %v468
    %v530 = vpack.c.b16 %v471, %v470
    %v531 = vpack.c.b16 %v473, %v472
    %v532 = vpack.c.b16 %v475, %v474
    %v533 = vpack.c.b16 %v477, %v476
    %v534 = vpack.c.b16 %v479, %v478
    %v535 = vpack.c.b16 %v481, %v480
    %v536 = vpack.c.b16 %v483, %v482
    %v537 = vpack.c.b16 %v485, %v484
    %v538 = vpack.c.b16 %v487, %v486
    %v539 = vpack.c.b16 %v489, %v488
    %v540 = vpack.c.b16 %v491, %v490
    %v541 = vpack.c.b16 %v493, %v492
    %v542 = vpack.c.b16 %v495, %v494
    %v543 = vpack.c.b16 %v497, %v496
    %v544 = vpack.c.b16 %v499, %v498
    %v545 = vpack.c.b16 %v501, %v500
    %v546 = vpack.c.b16 %v503, %v502
    %v547 = vpack.c.b16 %v505, %v504
    %v548 = vpack.c.b16 %v507, %v506
    %v549 = vpack.c.b16 %v509, %v508
    %v550 = vpack.c.b16 %v511, %v510
    %v551 = vpack.c.b16 %v513, %v512
    %v552 = vpack.c.b16 %v515, %v514
    %v553 = vpack.c.b16 %v517, %v516
    %v554 = vpack.c.b16 %v519, %v518
    %v555 = vpack.c.b16 %v521, %v520
    %v556 = vpack.c.b16 %v523, %v522
    %v557 = vpack.c.b16 %v525, %v524
    %590 = vmatprep.subr.bf16.mxu0 0
    %591 = vmatpush1.bf16.msra.mxu0 %v526
    %592 = vmatprep.subr.bf16.mxu0 0
    %593 = vmatpush1.bf16.msra.mxu0 %v527
    %594 = vmatprep.subr.bf16.mxu0 0
    %595 = vmatpush1.bf16.msra.mxu0 %v528
    %596 = vmatprep.subr.bf16.mxu0 0
    %597 = vmatpush1.bf16.msra.mxu0 %v529
    %598 = vmatprep.subr.bf16.mxu0 0
    %599 = vmatpush1.bf16.msra.mxu0 %v530
    %600 = vmatprep.subr.bf16.mxu0 0
    %601 = vmatpush1.bf16.msra.mxu0 %v531
    %602 = vmatprep.subr.bf16.mxu0 0
    %603 = vmatpush1.bf16.msra.mxu0 %v532
    %604 = vmatprep.subr.bf16.mxu0 0
    %605 = vmatpush1.bf16.msra.mxu0 %v533
    %606 = vmatprep.subr.bf16.mxu0 0
    %607 = vmatpush1.bf16.msra.mxu0 %v534
    %608 = vmatprep.subr.bf16.mxu0 0
    %609 = vmatpush1.bf16.msra.mxu0 %v535
    %610 = vmatprep.subr.bf16.mxu0 0
    %611 = vmatpush1.bf16.msra.mxu0 %v536
    %612 = vmatprep.subr.bf16.mxu0 0
    %613 = vmatpush1.bf16.msra.mxu0 %v537
    %614 = vmatprep.subr.bf16.mxu0 0
    %615 = vmatpush1.bf16.msra.mxu0 %v538
    %616 = vmatprep.subr.bf16.mxu0 0
    %617 = vmatpush1.bf16.msra.mxu0 %v539
    %618 = vmatprep.subr.bf16.mxu0 0
    %619 = vmatpush1.bf16.msra.mxu0 %v540
    %620 = vmatprep.subr.bf16.mxu0 0
    %621 = vmatpush1.bf16.msra.mxu0 %v541
    %622 = vmatprep.mubr.bf16.mxu0 %v391
    %623 = vmatmul.mubr.bf16.gmra.mrb[0].mxu0 %v390
    %v624 = vpop.f32.mrb[0].mxu0
    %v625 = vadd.f32 %v367, %v624
    %v626 = vpop.f32.mrb[0].mxu0
    %v627 = vpop.f32.mrb[0].mxu0
    %v628 = vpop.f32.mrb[0].mxu0
    %629 = vdwg.mxu0
    %630 = vmatprep.subr.bf16.mxu0 0
    %631 = vmatpush1.bf16.msra.mxu0 %v542
    %632 = vmatprep.subr.bf16.mxu0 0
    %633 = vmatpush1.bf16.msra.mxu0 %v543
    %634 = vmatprep.subr.bf16.mxu0 0
    %635 = vmatpush1.bf16.msra.mxu0 %v544
    %636 = vmatprep.subr.bf16.mxu0 0
    %637 = vmatpush1.bf16.msra.mxu0 %v545
    %638 = vmatprep.subr.bf16.mxu0 0
    %639 = vmatpush1.bf16.msra.mxu0 %v546
    %640 = vmatprep.subr.bf16.mxu0 0
    %641 = vmatpush1.bf16.msra.mxu0 %v547
    %642 = vmatprep.subr.bf16.mxu0 0
    %643 = vmatpush1.bf16.msra.mxu0 %v548
    %644 = vmatprep.subr.bf16.mxu0 0
    %645 = vmatpush1.bf16.msra.mxu0 %v549
    %646 = vmatprep.subr.bf16.mxu0 0
    %647 = vmatpush1.bf16.msra.mxu0 %v550
    %648 = vmatprep.subr.bf16.mxu0 0
    %649 = vmatpush1.bf16.msra.mxu0 %v551
    %650 = vmatprep.subr.bf16.mxu0 0
    %651 = vmatpush1.bf16.msra.mxu0 %v552
    %652 = vmatprep.subr.bf16.mxu0 0
    %653 = vmatpush1.bf16.msra.mxu0 %v553
    %654 = vmatprep.subr.bf16.mxu0 0
    %655 = vmatpush1.bf16.msra.mxu0 %v554
    %656 = vmatprep.subr.bf16.mxu0 0
    %657 = vmatpush1.bf16.msra.mxu0 %v555
    %658 = vmatprep.subr.bf16.mxu0 0
    %659 = vmatpush1.bf16.msra.mxu0 %v556
    %660 = vmatprep.subr.bf16.mxu0 0
    %661 = vmatpush1.bf16.msra.mxu0 %v557
    %662 = vmatprep.mubr.bf16.mxu0 %v393
    %663 = vmatmul.mubr.bf16.gmra.mrb[0].mxu0 %v392
    %v664 = vpop.f32.mrb[0].mxu0
    %v665 = vadd.f32 %v625, %v664
    %v666 = vpop.f32.mrb[0].mxu0
    %v667 = vpop.f32.mrb[0].mxu0
    %v668 = vpop.f32.mrb[0].mxu0
    %669 = vdwg.mxu0
    %670 = vst [vmem:[#allocation8] sm:$0x3] %v665
    // Predicated region
    $region34: #{tpu_custom_call.1} parent=1 // pred_check
      _
    $region35: #{tpu_custom_call.1} parent=1 // pred_check_branch
      %672 = sbr.rel (0) target = $region37
    $region36: #{tpu_custom_call.1} parent=1 // pred_region
      %s674 = ssub.s32 32, 32
      %675 = vsyncadd [#allocation4], %s674
      %s677 = sshll.u32 [#allocation8], 4
      %s678 = int_to_ptr.vmem [resolvable:$true] %s677
      %680 = dma.vmem_to_hbm [thread:$0]  %s678, 32, %s5, [#allocation4]
    $region37: #{tpu_custom_call.1} parent=1 // pred_fallthru
      _
    // Predicated region
    $region38: #{tpu_custom_call.1} parent=1 // pred_check
      _
    $region39: #{tpu_custom_call.1} parent=1 // pred_check_branch
      %682 = sbr.rel (0) target = $region41
    $region40: #{tpu_custom_call.1} parent=1 // pred_region
      %683 = dma.done [#allocation4], 32
    $region41: #{tpu_custom_call.1} parent=1 // pred_fallthru
      _
    %684 = vsyncpa [#allocation3], 1
    %685 = vsyncpa [#allocation6], 1
    %686 = vsyncpa [#allocation4], 1

</llo_original>
